<compile_context>
chip_gen: v5e
topology: v5e:2x2
jax: 0.10.0
libtpu: 0.0.40
codegen_flags: <defaults>
</compile_context>

<pallas_src>
import functools

import jax
import jax.numpy as jnp
from jax.experimental import pallas as pl
from jax.experimental.pallas import tpu as pltpu


def attention_kernel(x_ref, w_ref, b_ref, r_ref, acc_ref, *, t_total, need_mask):
    k = pl.program_id(0)

    @pl.when(k == 0)
    def _init():
        acc_ref[...] = jnp.zeros_like(acc_ref)

    x = x_ref[...].astype(jnp.float32)          # (tT, B, D), cast per tile
    w = w_ref[...].astype(jnp.float32)          # (1, D)  nn.Linear(d, 1).weight
    bias = b_ref[0]                             # scalar  nn.Linear(d, 1).bias (SMEM)

    t_tile, bsz, _ = x.shape

    if need_mask:
        # Mask rows of a partial final tile (their VMEM contents are unspecified,
        # could even be NaN); one where() on the big tensor keeps both the softmax
        # and the accumulation clean.
        t_ids = k * t_tile + jax.lax.broadcasted_iota(jnp.int32, (t_tile, bsz), 0)
        valid = t_ids < t_total
        x = jnp.where(valid[:, :, None], x, 0.0)

    # feedforward (out_features = 1) + tanh:  m[t, b] = tanh(x[t, b, :] @ w + bias)
    m = jnp.tanh(jnp.sum(x * w, axis=-1) + bias)              # (tT, B)

    # Legacy nn.Softmax() (dim=0 of the permuted (B, T, 1) tensor) == softmax over
    # the batch axis, independently for every t -> exact under T tiling.
    m = m - jnp.max(m, axis=1, keepdims=True)
    e = jnp.exp(m)
    denom = jnp.sum(e, axis=1, keepdims=True)                 # (tT, 1)
    inv = pl.reciprocal(denom, approx=True)                   # EUP slot
    inv = inv * (2.0 - denom * inv)                           # Newton step -> f32 accuracy
    alpha = e * inv                                           # (tT, B)

    # r[b, d] += sum_t x[t, b, d] * alpha[t, b]   (reduce over the leading tile axis)
    acc_ref[...] += jnp.sum(x * alpha[:, :, None], axis=0)

    @pl.when(k == pl.num_programs(0) - 1)
    def _finalize():
        r_ref[...] = acc_ref[...].astype(r_ref.dtype)


def _pick_tile(t_total, bsz, d, t_tile, vmem_budget_bytes=8 * 1024 * 1024):
    # Largest T-tile whose double-buffered f32 copy fits comfortably in VMEM.
    bytes_per_row = bsz * d * 4
    max_tile = max(8, vmem_budget_bytes // (2 * bytes_per_row))
    return max(1, min(t_total, t_tile, max_tile))


def _attention_pallas(x_native, weight, bias, *, t_tile):
    """x_native: (T, B, D); softmax over B per t, weighted sum over T -> (B, D)."""
    t_total, bsz, d = x_native.shape
    tile = _pick_tile(t_total, bsz, d, t_tile)
    grid = (pl.cdiv(t_total, tile),)
    need_mask = (t_total % tile) != 0

    kernel = functools.partial(attention_kernel, t_total=t_total, need_mask=need_mask)

    return pl.pallas_call(
        kernel,
        out_shape=jax.ShapeDtypeStruct((bsz, d), jnp.float32),
        grid_spec=pltpu.PrefetchScalarGridSpec(
            num_scalar_prefetch=0,
            grid=grid,
            in_specs=[
                pl.BlockSpec((tile, bsz, d), lambda k: (k, 0, 0)),    # x tile (pipelined)
                pl.BlockSpec((1, d), lambda k: (0, 0)),               # weight, VMEM-resident
                pl.BlockSpec(memory_space=pltpu.MemorySpace.SMEM),    # bias scalar
            ],
            out_specs=pl.BlockSpec((bsz, d), lambda k: (0, 0)),       # resident output
            scratch_shapes=[pltpu.VMEM((bsz, d), jnp.float32)],       # f32 accumulator
        ),
        compiler_params=pltpu.CompilerParams(
            dimension_semantics=("arbitrary",),      # T axis is a reduction
            vmem_limit_bytes=32 * 1024 * 1024,       # safe on v5e/v6e (128 MiB) & v7x (64 MiB)
        ),
    )(x_native, weight.astype(jnp.float32), bias.astype(jnp.float32))


def attention_forward(x, weight, bias, d=128, t_tile=1024):
    # Same branching as the PyTorch forward, but NO transpose on the main path:
    # the kernel works directly on the native (T, B, 128) layout.
    if x.shape[-1] == 128:
        x_native = x                                  # (T, B, 128)
    else:
        # torch.transpose(x, -1, -2) branch: rearrange once so the kernel sees
        # (T', B', D) with softmax over B'.  (Secondary path; one HBM transpose.)
        x_native = jnp.transpose(x, (2, 0, 1))
    r = _attention_pallas(x_native, weight, bias, t_tile=t_tile)   # (B, D)
    return r[:, :, None]                                           # (B, D, 1) like torch.bmm


def attention_ref(x, weight, bias, d=128):
    # Pure-JAX reference mirroring the PyTorch forward exactly.
    if x.shape[-1] == 128:
        xp = jnp.transpose(x, (1, 0, 2))
    else:
        xp = jnp.swapaxes(x, -1, -2)
    m = jnp.tanh(xp @ weight.T + bias)                        # (B, T, 1)
    m_max = jnp.max(m, axis=0, keepdims=True)
    e = jnp.exp(m - m_max)
    alpha = e / jnp.sum(e, axis=0, keepdims=True)             # legacy softmax over dim 0
    r = jnp.einsum("bdt,bto->bdo", jnp.swapaxes(xp, -1, -2), alpha)
    return r


if __name__ == "__main__":
    d = 128      # feature dim required by the Linear layer
    T = 8        # sequence length
    B = 2        # batch

    key = jax.random.PRNGKey(0)
    kx, kw, kb, kx2 = jax.random.split(key, 4)

    # Input in PyTorch's seq-first convention: (T, B, d) with last dim == 128.
    x = jax.random.normal(kx, (T, B, d), dtype=jnp.float32)

    # nn.Linear(128, 1): weight (1, 128), bias (1,), uniform(-1/sqrt(d), 1/sqrt(d)).
    bound = 1.0 / jnp.sqrt(jnp.float32(d))
    weight = jax.random.uniform(kw, (1, d), jnp.float32, -bound, bound)
    bias = jax.random.uniform(kb, (1,), jnp.float32, -bound, bound)

    # t_tile=4 -> 2 grid steps: exercises accumulator init / accumulate / finalize.
    out = attention_forward(x, weight, bias, d=d, t_tile=4)
    out = jax.block_until_ready(out)
    ref = attention_ref(x, weight, bias, d=d)
    assert out.shape == (B, d, 1), out.shape
    assert jnp.allclose(out, ref, atol=1e-4, rtol=1e-4), (
        float(jnp.max(jnp.abs(out - ref)))
    )

    # Ragged T (7 with tile 4) exercises the partial-tile mask path.
    x2 = jax.random.normal(kx2, (7, B, d), dtype=jnp.float32)
    out2 = jax.block_until_ready(attention_forward(x2, weight, bias, d=d, t_tile=4))
    ref2 = attention_ref(x2, weight, bias, d=d)
    assert jnp.allclose(out2, ref2, atol=1e-4, rtol=1e-4), (
        float(jnp.max(jnp.abs(out2 - ref2)))
    )

    print("KERNEL_OK")
</pallas_src>

<mosaic_0001>
module attributes {stable_mosaic.version = 11 : i64} {
  func.func @attention_kernel(%arg0: i32, %arg1: memref<4x2x128xf32, #tpu.memory_space<vmem>>, %arg2: memref<1x128xf32, #tpu.memory_space<vmem>>, %arg3: memref<1xf32, #tpu.memory_space<smem>>, %arg4: memref<2x128xf32, #tpu.memory_space<vmem>>, %arg5: memref<2x128xf32, #tpu.memory_space<vmem>>) attributes {dimension_semantics = [#tpu.dimension_semantics<arbitrary>], iteration_bounds = array<i64: 2>, scalar_prefetch = 0 : i64, scratch_operands = 1 : i64, tpu.core_type = #tpu.core_type<tc>, window_params = [{transform_indices = @transform_0, window_bounds = array<i64: 4, 2, 128>}, {pipeline_mode = #tpu.pipeline_mode<synchronous>, transform_indices = @transform_1, window_bounds = array<i64: 1, 128>}, {transform_indices = @transform_2, window_bounds = array<i64: 1>}, {pipeline_mode = #tpu.pipeline_mode<synchronous>, transform_indices = @transform_3, window_bounds = array<i64: 2, 128>}]} {
    %c0_i32 = arith.constant 0 : i32
    %0 = arith.cmpi eq, %arg0, %c0_i32 : i32
    %1 = arith.extui %0 : i1 to i32
    %c0_i32_0 = arith.constant 0 : i32
    %2 = arith.cmpi ne, %1, %c0_i32_0 : i32
    scf.if %2 {
      %cst_15 = arith.constant 0.000000e+00 : f32
      %37 = vector.broadcast %cst_15 : f32 to vector<2x128xf32>
      %c0_16 = arith.constant 0 : index
      %c0_17 = arith.constant 0 : index
      %38 = vector.load %arg5[%c0_16, %c0_17] : memref<2x128xf32, #tpu.memory_space<vmem>>, vector<2x128xf32>
      tpu.vector_store %arg5[%c0_16, %c0_17], %37 {strides = array<i32>} : memref<2x128xf32, #tpu.memory_space<vmem>>, vector<2x128xf32>,
    } else {
    }
    %c0 = arith.constant 0 : index
    %c0_1 = arith.constant 0 : index
    %c0_2 = arith.constant 0 : index
    %3 = vector.load %arg1[%c0, %c0_1, %c0_2] : memref<4x2x128xf32, #tpu.memory_space<vmem>>, vector<4x2x128xf32>
    %c0_3 = arith.constant 0 : index
    %c0_4 = arith.constant 0 : index
    %4 = vector.load %arg2[%c0_3, %c0_4] : memref<1x128xf32, #tpu.memory_space<vmem>>, vector<1x128xf32>
    %c0_5 = arith.constant 0 : index
    %5 = memref.load %arg3[%c0_5] : memref<1xf32, #tpu.memory_space<smem>>
    %6 = vector.shape_cast %4 : vector<1x128xf32> to vector<1x1x128xf32>
    %7 = vector.broadcast %6 : vector<1x1x128xf32> to vector<4x2x128xf32>
    %8 = arith.mulf %3, %7 : vector<4x2x128xf32>
    %cst = arith.constant dense<0.000000e+00> : vector<4x2xf32>
    %9 = vector.multi_reduction <add>, %8, %cst [2] : vector<4x2x128xf32> to vector<4x2xf32>
    %10 = vector.broadcast %5 : f32 to vector<4x2xf32>
    %11 = arith.addf %9, %10 : vector<4x2xf32>
    %12 = math.tanh %11 : vector<4x2xf32>
    %cst_6 = arith.constant dense<0xFF800000> : vector<4xf32>
    %13 = vector.multi_reduction <maximumf>, %12, %cst_6 [1] : vector<4x2xf32> to vector<4xf32>
    %14 = vector.shape_cast %13 : vector<4xf32> to vector<4x1xf32>
    %15 = vector.broadcast %14 : vector<4x1xf32> to vector<4x2xf32>
    %16 = arith.subf %12, %15 : vector<4x2xf32>
    %17 = math.exp %16 : vector<4x2xf32>
    %cst_7 = arith.constant dense<0.000000e+00> : vector<4xf32>
    %18 = vector.multi_reduction <add>, %17, %cst_7 [1] : vector<4x2xf32> to vector<4xf32>
    %19 = vector.shape_cast %18 : vector<4xf32> to vector<4x1xf32>
    %20 = tpu.reciprocal %19 {approx = true} : vector<4x1xf32> -> vector<4x1xf32>
    %21 = arith.mulf %19, %20 : vector<4x1xf32>
    %cst_8 = arith.constant 2.000000e+00 : f32
    %22 = vector.broadcast %cst_8 : f32 to vector<4x1xf32>
    %23 = arith.subf %22, %21 : vector<4x1xf32>
    %24 = arith.mulf %20, %23 : vector<4x1xf32>
    %25 = vector.broadcast %24 : vector<4x1xf32> to vector<4x2xf32>
    %26 = arith.mulf %17, %25 : vector<4x2xf32>
    %c0_9 = arith.constant 0 : index
    %c0_10 = arith.constant 0 : index
    %27 = vector.load %arg5[%c0_9, %c0_10] : memref<2x128xf32, #tpu.memory_space<vmem>>, vector<2x128xf32>
    %28 = vector.shape_cast %26 : vector<4x2xf32> to vector<4x2x1xf32>
    %29 = vector.broadcast %28 : vector<4x2x1xf32> to vector<4x2x128xf32>
    %30 = arith.mulf %3, %29 : vector<4x2x128xf32>
    %cst_11 = arith.constant dense<0.000000e+00> : vector<2x128xf32>
    %31 = vector.multi_reduction <add>, %30, %cst_11 [0] : vector<4x2x128xf32> to vector<2x128xf32>
    %32 = arith.addf %27, %31 : vector<2x128xf32>
    %c0_12 = arith.constant 0 : index
    %c0_13 = arith.constant 0 : index
    %33 = vector.load %arg5[%c0_12, %c0_13] : memref<2x128xf32, #tpu.memory_space<vmem>>, vector<2x128xf32>
    tpu.vector_store %arg5[%c0_12, %c0_13], %32 {strides = array<i32>} : memref<2x128xf32, #tpu.memory_space<vmem>>, vector<2x128xf32>,
    %c1_i32 = arith.constant 1 : i32
    %34 = arith.cmpi eq, %arg0, %c1_i32 : i32
    %35 = arith.extui %34 : i1 to i32
    %c0_i32_14 = arith.constant 0 : i32
    %36 = arith.cmpi ne, %35, %c0_i32_14 : i32
    scf.if %36 {
      %c0_15 = arith.constant 0 : index
      %c0_16 = arith.constant 0 : index
      %37 = vector.load %arg5[%c0_15, %c0_16] : memref<2x128xf32, #tpu.memory_space<vmem>>, vector<2x128xf32>
      %c0_17 = arith.constant 0 : index
      %c0_18 = arith.constant 0 : index
      %38 = vector.load %arg4[%c0_17, %c0_18] : memref<2x128xf32, #tpu.memory_space<vmem>>, vector<2x128xf32>
      tpu.vector_store %arg4[%c0_17, %c0_18], %37 {strides = array<i32>} : memref<2x128xf32, #tpu.memory_space<vmem>>, vector<2x128xf32>,
    } else {
    }
    return
  }
  func.func @transform_0(%arg0: i32) -> (i32, i32, i32) {
    %c0_i32 = arith.constant 0 : i32
    %c0_i32_0 = arith.constant 0 : i32
    %c0_i32_1 = arith.constant 0 : i32
    return %arg0, %c0_i32, %c0_i32_0 : i32, i32, i32
  }
  func.func @transform_1(%arg0: i32) -> (i32, i32) {
    %c0_i32 = arith.constant 0 : i32
    %c0_i32_0 = arith.constant 0 : i32
    %c0_i32_1 = arith.constant 0 : i32
    return %c0_i32, %c0_i32_0 : i32, i32
  }
  func.func @transform_2(%arg0: i32) -> i32 {
    %c0_i32 = arith.constant 0 : i32
    %c0_i32_0 = arith.constant 0 : i32
    return %c0_i32 : i32
  }
  func.func @transform_3(%arg0: i32) -> (i32, i32) {
    %c0_i32 = arith.constant 0 : i32
    %c0_i32_0 = arith.constant 0 : i32
    %c0_i32_1 = arith.constant 0 : i32
    return %c0_i32, %c0_i32_0 : i32, i32
  }
}

</mosaic_0001>

<llo_original>
// kernel: tpu_custom_call.1
$region0: #{tpu_custom_call.1}
  #allocation0 [shape = 'u32[]', space=smem, size = 0x4, offset = 0x4, fixed_abs, tag = 'smem constant byte address 0x4 - core index']
  #allocation1 [shape = 'u32[72,128]{1,0:T(1,128)}', space=vmem, size = 0x9000, scoped, tag = 'internal scratch']
  #allocation2 [shape = 'f32[2,128]{1,0:T(2,128)}', space=vmem, size = 0x400, scoped, tag = 'scratch operand']
  #allocation3 [shape = 'f32[1]{0:T(128)S(6)}', space=smem, size = 0x200, scoped, tag = 'scoped memory for tpu_custom_call.1']
  %s0 = inlined_call_operand.hbm [shape: f32[8,2,128], index: 0, kind: input, shape index: {}]
  %s1 = inlined_call_operand.vmem [shape: f32[1,128], index: 1, kind: input, shape index: {}]
  %s2 = inlined_call_operand.<no memory space> [shape: f32[1], index: 2, kind: input, shape index: {}]
  %s3 = inlined_call_operand.hbm [shape: f32[2,128], index: 3, kind: output, shape index: {}]
  %s4 = sld [smem:[#allocation0]]
  $region57: #{tpu_custom_call.1} parent=0
    _
  %s6 = ssub.s32 1, %s4
  %s7 = scalar_select 0, %s6, %s4
  %8 = sst [smem:[#allocation3]] %s2
  $region1: #{tpu_custom_call.1} parent=0
    #allocation4 [shape = 'u8[8192]{0}', space=vmem, size = 0x2000, scoped, tag = 'input window, operand 0']
    #allocation5 [shape = 's32[2]{0}', space=sflag, size = 0x8, scoped, tag = 'scoped memory for tpu_custom_call.1']
    #allocation6 [shape = 's32[2]{0}', space=sflag, size = 0x8, scoped, tag = 'scoped memory for tpu_custom_call.1']
    #allocation7 [shape = 'u8[1024]{0}', space=vmem, size = 0x400, scoped, tag = 'output window, operand 0, single buffered']
    %9 = vsyncpa [#allocation5], 0
    %s10 = scalar_lea.sflag [#allocation5], 1
    %11 = vsyncpa %s10, 0
    %12 = vsyncpa [#allocation6], 0
    loop: start=0, step=1, limit=4
    $region2: #{tpu_custom_call.1} parent=1 // loop_pre_header
      _
    $region3: #{tpu_custom_call.1} parent=1 // loop_header
      %s14 = sphi 0, %s18
      %p15 = scmp.ge.s32.totalorder %s14, 4
      %s24 = sphi 0, %s26
      %s27 = sphi 0, %s24
      %s28 = sphi 0, %s27
      %s44 = sphi 0, %s28
      %s48 = sphi 0, %s48
      %s50 = sphi 0, %s48
      %s51 = sphi 0, %s50
      %s65 = sphi 0, %s51
      %s69 = sphi 0, %s69
      %s71 = sphi 0, %s69
      %s72 = sphi 0, %s71
      %s86 = sphi 0, %s72
      %s90 = sphi 0, %s90
      %s92 = sphi 0, %s90
      %s93 = sphi 0, %s92
      %s107 = sphi 0, %s93
    $region4: #{tpu_custom_call.1} parent=1 // loop_header_branch
      %17 = sbr.rel (%p15) target = $region8
    $region5: #{tpu_custom_call.1} parent=1 // loop_body
      %s19 = ssub.s32 %s14, 1
      %s20 = ssub.s32 %s14, 2
      %s21 = sadd.s32 %s14, 1
      %s22 = ssub.s32 %s14, %s21
      %p23 = scmp.eq.s32.totalorder %s22, 0
      %s25 = sadd.s32 %s24, 1
      %s26 = scalar_select %p23, %s24, %s25
      %p29 = pneg %p23
      %p30 = scmp.eq.s32.totalorder %s14, 1
      %p31 = por %p29, %p30
      %p32 = scmp.ne.s32.totalorder %s24, %s27
      %p33 = scmp.eq.s32.totalorder %s14, 0
      %p34 = por %p32, %p33
      %p35 = scmp.ne.s32.totalorder %s24, %s27
      %p36 = scmp.eq.s32.totalorder %s19, 1
      %p37 = por %p35, %p36
      %p38 = scmp.ne.s32.totalorder %s27, %s28
      %p39 = scmp.eq.s32.totalorder %s19, 0
      %p40 = por %p38, %p39
      %p41 = scmp.ne.s32.totalorder %s27, %s28
      %p42 = scmp.eq.s32.totalorder %s20, 1
      %p43 = por %p41, %p42
      %p45 = scmp.ne.s32.totalorder %s28, %s44
      %p46 = scmp.eq.s32.totalorder %s20, 0
      %p47 = por %p45, %p46
      %s49 = sadd.s32 %s48, 1
      %p52 = scmp.eq.s32.totalorder %s14, 1
      %p53 = scmp.ne.s32.totalorder %s48, %s50
      %p54 = scmp.eq.s32.totalorder %s14, 0
      %p55 = por %p53, %p54
      %p56 = scmp.ne.s32.totalorder %s48, %s50
      %p57 = scmp.eq.s32.totalorder %s19, 1
      %p58 = por %p56, %p57
      %p59 = scmp.ne.s32.totalorder %s50, %s51
      %p60 = scmp.eq.s32.totalorder %s19, 0
      %p61 = por %p59, %p60
      %p62 = scmp.ne.s32.totalorder %s50, %s51
      %p63 = scmp.eq.s32.totalorder %s20, 1
      %p64 = por %p62, %p63
      %p66 = scmp.ne.s32.totalorder %s51, %s65
      %p67 = scmp.eq.s32.totalorder %s20, 0
      %p68 = por %p66, %p67
      %s70 = sadd.s32 %s69, 1
      %p73 = scmp.eq.s32.totalorder %s14, 1
      %p74 = scmp.ne.s32.totalorder %s69, %s71
      %p75 = scmp.eq.s32.totalorder %s14, 0
      %p76 = por %p74, %p75
      %p77 = scmp.ne.s32.totalorder %s69, %s71
      %p78 = scmp.eq.s32.totalorder %s19, 1
      %p79 = por %p77, %p78
      %p80 = scmp.ne.s32.totalorder %s71, %s72
      %p81 = scmp.eq.s32.totalorder %s19, 0
      %p82 = por %p80, %p81
      %p83 = scmp.ne.s32.totalorder %s71, %s72
      %p84 = scmp.eq.s32.totalorder %s20, 1
      %p85 = por %p83, %p84
      %p87 = scmp.ne.s32.totalorder %s72, %s86
      %p88 = scmp.eq.s32.totalorder %s20, 0
      %p89 = por %p87, %p88
      %s91 = sadd.s32 %s90, 1
      %p94 = scmp.eq.s32.totalorder %s14, 1
      %p95 = scmp.ne.s32.totalorder %s90, %s92
      %p96 = scmp.eq.s32.totalorder %s14, 0
      %p97 = por %p95, %p96
      %p98 = scmp.ne.s32.totalorder %s90, %s92
      %p99 = scmp.eq.s32.totalorder %s19, 1
      %p100 = por %p98, %p99
      %p101 = scmp.ne.s32.totalorder %s92, %s93
      %p102 = scmp.eq.s32.totalorder %s19, 0
      %p103 = por %p101, %p102
      %p104 = scmp.ne.s32.totalorder %s92, %s93
      %p105 = scmp.eq.s32.totalorder %s20, 1
      %p106 = por %p104, %p105
      %p108 = scmp.ne.s32.totalorder %s93, %s107
      %p109 = scmp.eq.s32.totalorder %s20, 0
      %p110 = por %p108, %p109
      %p111 = scmp.le.s32.totalorder 1, %s14
      %p112 = scmp.lt.s32.totalorder %s14, 3
      %p113 = pnand %p111, %p112
      %p114 = pneg %p113
      // Predicated region
      $region9: #{tpu_custom_call.1} parent=5 // pred_check
        _
      $region10: #{tpu_custom_call.1} parent=5 // pred_check_branch
        %116 = sbr.rel (%p113) target = $region12
      $region11: #{tpu_custom_call.1} parent=5 // pred_region
        %s117 = ssub.s32 %s14, 1
        // Predicated region
        $region13: #{tpu_custom_call.1} parent=11 // pred_check
          %p118 = pneg %p61
        $region14: #{tpu_custom_call.1} parent=11 // pred_check_branch
          %120 = sbr.rel (%p118) target = $region16
        $region15: #{tpu_custom_call.1} parent=11 // pred_region
          _
        $region16: #{tpu_custom_call.1} parent=11 // pred_fallthru
          _
        // Predicated region
        $region17: #{tpu_custom_call.1} parent=11 // pred_check
          %p121 = pneg %p82
        $region18: #{tpu_custom_call.1} parent=11 // pred_check_branch
          %123 = sbr.rel (%p121) target = $region20
        $region19: #{tpu_custom_call.1} parent=11 // pred_region
          _
        $region20: #{tpu_custom_call.1} parent=11 // pred_fallthru
          _
      $region12: #{tpu_custom_call.1} parent=5 // pred_fallthru
        _
      %p124 = scmp.lt.s32.totalorder %s14, 2
      // Predicated region
      $region21: #{tpu_custom_call.1} parent=5 // pred_check
        %p125 = pneg %p124
      $region22: #{tpu_custom_call.1} parent=5 // pred_check_branch
        %127 = sbr.rel (%p125) target = $region24
      $region23: #{tpu_custom_call.1} parent=5 // pred_region
        // Predicated region
        $region25: #{tpu_custom_call.1} parent=23 // pred_check
          %p128 = pneg %p34
        $region26: #{tpu_custom_call.1} parent=23 // pred_check_branch
          %130 = sbr.rel (%p128) target = $region28
        $region27: #{tpu_custom_call.1} parent=23 // pred_region
          %s131 = sand.u32 %s24, 1
          %s132 = scalar_lea.sflag [#allocation5], %s131
          %s133 = sand.u32 %s24, 1
          %s134 = smul.addr %s133, 8
          %s135 = scalar_lea.vmem [#allocation4], %s134
          %s136 = smul.u32 4, %s14
          %138 = vsyncadd %s132, 0
          %s139 = smul.addr %s136, 2
          %s140 = scalar_lea.hbm %s0, %s139
          %s141 = sshll.u32 %s140, 4
          %s142 = int_to_ptr.hbm [resolvable:$true] %s141
          %s143 = sshll.u32 %s135, 4
          %s144 = int_to_ptr.vmem [resolvable:$true] %s143
          %149 = dma.hbm_to_vmem [thread:$0]  %s142, 128, %s144, %s132, 32, 32, 2
        $region28: #{tpu_custom_call.1} parent=23 // pred_fallthru
          _
      $region24: #{tpu_custom_call.1} parent=5 // pred_fallthru
        _
      %p150 = scmp.le.s32.totalorder 1, %s14
      %p151 = scmp.lt.s32.totalorder %s14, 3
      %p152 = pnand %p150, %p151
      %p153 = pneg %p152
      // Predicated region
      $region29: #{tpu_custom_call.1} parent=5 // pred_check
        _
      $region30: #{tpu_custom_call.1} parent=5 // pred_check_branch
        %155 = sbr.rel (%p152) target = $region32
      $region31: #{tpu_custom_call.1} parent=5 // pred_region
        %s156 = ssub.s32 %s14, 1
        %s157 = sand.u32 %s27, 1
        %s158 = scalar_lea.sflag [#allocation5], %s157
        %s159 = sand.u32 %s27, 1
        %s160 = smul.addr %s159, 8
        %s161 = scalar_lea.vmem [#allocation4], %s160
        // Predicated region
        $region33: #{tpu_custom_call.1} parent=31 // pred_check
          %p162 = pneg %p40
        $region34: #{tpu_custom_call.1} parent=31 // pred_check_branch
          %164 = sbr.rel (%p162) target = $region36
        $region35: #{tpu_custom_call.1} parent=31 // pred_region
          %166 = dma.done %s158, 128
        $region36: #{tpu_custom_call.1} parent=31 // pred_fallthru
          _
        %s167 = sand.u32 %s27, 1
        %s168 = scalar_lea.sflag [#allocation5], %s167
        %s169 = sand.u32 %s27, 1
        %s170 = smul.addr %s169, 8
        %s171 = scalar_lea.vmem [#allocation4], %s170
        %p172 = pneg %p40
        %p173 = pneg %p37
        %p174 = pneg %p61
        %p175 = pneg %p58
        %p176 = pneg %p82
        %p177 = pneg %p79
        %p178 = pneg %p103
        %p179 = pneg %p100
        %s180 = smul.u32 4, %s19
        %p181 = scmp.eq.s32.totalorder %s19, 0
        // Predicated region
        $region37: #{tpu_custom_call.1} parent=31 // pred_check
          %p182 = pneg %p181
        $region38: #{tpu_custom_call.1} parent=31 // pred_check_branch
          %184 = sbr.rel (%p182) target = $region40
        $region39: #{tpu_custom_call.1} parent=31 // pred_region
          %185 = vst [vmem:[#allocation2] sm:$0x3] 0.0
        $region40: #{tpu_custom_call.1} parent=31 // pred_fallthru
          _
        %v186 = vld [vmem:[%s161] sm:$0x3]
        %v187 = vld [vmem:[%s161 + $0x2] sm:$0x3]
        %v188 = vld [vmem:[%s161 + $0x4] sm:$0x3]
        %v189 = vld [vmem:[%s161 + $0x6] sm:$0x3]
        %v190 = vld [vmem:[%s1] sm:$0x1]
        %s191 = sld [smem:[#allocation3]]
        %v193 = vperm.slane %v190, 0
        %v195 = vmul.f32 %v186, %v193
        %v196 = vmul.f32 %v187, %v193
        %v197 = vmul.f32 %v188, %v193
        %v198 = vmul.f32 %v189, %v193
        %vm199 = vcmask 1041408
        %v200 = vsel %vm199, %v195, 0.0
        %201 = vadd.xlane.f32.xlu0 %v200
        %v202 = vpop.xlane.xlu0 %201
        %v203 = vsel %vm199, %v196, 0.0
        %204 = vadd.xlane.f32.xlu0 %v203
        %v205 = vpop.xlane.xlu0 %204
        %v206 = vsel %vm199, %v197, 0.0
        %207 = vadd.xlane.f32.xlu0 %v206
        %v208 = vpop.xlane.xlu0 %207
        %v209 = vsel %vm199, %v198, 0.0
        %210 = vadd.xlane.f32.xlu0 %v209
        %v211 = vpop.xlane.xlu0 %210
        %v212 = vstv %s191
        %v213 = vadd.f32 %v202, %v212
        %v214 = vadd.f32 %v205, %v212
        %v215 = vadd.f32 %v208, %v212
        %v216 = vadd.f32 %v211, %v212
        %v217 = vtanh.pop %v213
        %v218 = vtanh.pop %v214
        %v219 = vtanh.pop %v215
        %v220 = vtanh.pop %v216
        %v225 = vlaneseq
        %v226 = vand.u32 %v225, 127
        %v227 = vperm.slane %v217, %v226
        %v228 = vperm.slane %v218, %v226
        %v229 = vperm.slane %v219, %v226
        %v230 = vperm.slane %v220, %v226
        %vm231 = vcmask 1041409
        %v232 = vsel %vm231, %v228, %v227
        %vm233 = vcmask 1042434
        %v234 = vsel %vm233, %v229, %v232
        %vm235 = vcmask 1043459
        %v236 = vsel %vm235, %v230, %v234
        %vm238 = vcmask 11264
        %v239 = vsel %vm238, %v236, -inf
        %240 = vmax.xlane.f32.xlu0 %v239
        %v241 = vpop.xlane.xlu0 %240
        %v243 = vperm.slane %v241, 0
        %v244 = vperm.slane %v241, 1
        %v245 = vperm.slane %v241, 2
        %v246 = vperm.slane %v241, 3
        %v251 = vsub.f32 %v217, %v243
        %v252 = vsub.f32 %v218, %v244
        %v253 = vsub.f32 %v219, %v245
        %v254 = vsub.f32 %v220, %v246
        %v255 = vmul.f32 %v251, 1.442695
        %v256 = vpow.pop %v255
        %v257 = vmul.f32 %v252, 1.442695
        %v258 = vpow.pop %v257
        %v259 = vmul.f32 %v253, 1.442695
        %v260 = vpow.pop %v259
        %v261 = vmul.f32 %v254, 1.442695
        %v262 = vpow.pop %v261
        %267 = vset.pattern.permute.xlu0 0
        %268 = vperm.xlu0 %267, %v256
        %v269 = vpop.permute.xlu0 %268
        %270 = vset.pattern.permute.xlu0 0
        %271 = vperm.xlu0 %270, %v258
        %v272 = vpop.permute.xlu0 %271
        %273 = vset.pattern.permute.xlu0 0
        %274 = vperm.xlu0 %273, %v260
        %v275 = vpop.permute.xlu0 %274
        %276 = vset.pattern.permute.xlu0 0
        %277 = vperm.xlu0 %276, %v262
        %v278 = vpop.permute.xlu0 %277
        %v279 = vperm.slane %v269, %v226
        %v280 = vperm.slane %v272, %v226
        %v281 = vperm.slane %v275, %v226
        %v282 = vperm.slane %v278, %v226
        %v283 = vsel %vm231, %v280, %v279
        %v284 = vsel %vm233, %v281, %v283
        %v285 = vsel %vm235, %v282, %v284
        %v287 = vsel %vm238, %v285, 0.0
        %288 = vadd.xlane.f32.xlu0 %v287
        %v289 = vpop.xlane.xlu0 %288
        %v290 = vrcp.pop %v289
        %v291 = vmul.f32 %v289, %v290
        %v292 = vsub.f32 2.0, %v291
        %v293 = vmul.f32 %v290, %v292
        %v295 = vperm.slane %v293, 0
        %v296 = vperm.slane %v293, 1
        %v297 = vperm.slane %v293, 2
        %v298 = vperm.slane %v293, 3
        %v303 = vmul.f32 %v256, %v295
        %v304 = vmul.f32 %v258, %v296
        %v305 = vmul.f32 %v260, %v297
        %v306 = vmul.f32 %v262, %v298
        %v307 = vld [vmem:[#allocation2] sm:$0x3]
        %309 = vset.pattern.permute.xlu0 0
        %310 = vperm.xlu0 %309, %v303
        %v311 = vpop.permute.xlu0 %310
        %314 = vset.pattern.permute.xlu0 0
        %315 = vperm.xlu0 %314, %v304
        %v316 = vpop.permute.xlu0 %315
        %319 = vset.pattern.permute.xlu0 0
        %320 = vperm.xlu0 %319, %v305
        %v321 = vpop.permute.xlu0 %320
        %324 = vset.pattern.permute.xlu0 0
        %325 = vperm.xlu0 %324, %v306
        %v326 = vpop.permute.xlu0 %325
        %v328 = vmul.f32 %v186, %v311
        %v329 = vmul.f32 %v187, %v316
        %v330 = vmul.f32 %v188, %v321
        %v331 = vmul.f32 %v189, %v326
        %v332 = vsel %vm199, %v328, 0.0
        %v333 = vsel %vm199, %v329, 0.0
        %v334 = vadd.f32 %v332, %v333
        %v335 = vsel %vm199, %v330, 0.0
        %v336 = vadd.f32 %v334, %v335
        %v337 = vsel %vm199, %v331, 0.0
        %v338 = vadd.f32 %v336, %v337
        %v339 = vadd.f32 %v307, %v338
        %340 = vst [vmem:[#allocation2] sm:$0x3] %v339
        %p341 = scmp.eq.s32.totalorder %s19, 1
        // Predicated region
        $region41: #{tpu_custom_call.1} parent=31 // pred_check
          %p342 = pneg %p341
        $region42: #{tpu_custom_call.1} parent=31 // pred_check_branch
          %344 = sbr.rel (%p342) target = $region44
        $region43: #{tpu_custom_call.1} parent=31 // pred_region
          %v345 = vld [vmem:[#allocation2] sm:$0x3]
          %346 = vst [vmem:[#allocation7] sm:$0x3] %v345
        $region44: #{tpu_custom_call.1} parent=31 // pred_fallthru
          _
        // Predicated region
        $region45: #{tpu_custom_call.1} parent=31 // pred_check
          %p347 = pneg %p100
        $region46: #{tpu_custom_call.1} parent=31 // pred_check_branch
          %349 = sbr.rel (%p347) target = $region48
        $region47: #{tpu_custom_call.1} parent=31 // pred_region
          %351 = vsyncadd [#allocation6], 0
          %s353 = sshll.u32 [#allocation7], 4
          %s354 = int_to_ptr.vmem [resolvable:$true] %s353
          %s355 = sshll.u32 %s3, 4
          %s356 = int_to_ptr.hbm [resolvable:$true] %s355
          %358 = dma.vmem_to_hbm [thread:$0]  %s354, 32, %s356, [#allocation6]
        $region48: #{tpu_custom_call.1} parent=31 // pred_fallthru
          _
        // Predicated region
        $region49: #{tpu_custom_call.1} parent=31 // pred_check
          %p359 = pneg %p100
        $region50: #{tpu_custom_call.1} parent=31 // pred_check_branch
          %361 = sbr.rel (%p359) target = $region52
        $region51: #{tpu_custom_call.1} parent=31 // pred_region
          %363 = dma.done [#allocation6], 32
        $region52: #{tpu_custom_call.1} parent=31 // pred_fallthru
          _
      $region32: #{tpu_custom_call.1} parent=5 // pred_fallthru
        _
      %p364 = scmp.le.s32.totalorder 2, %s14
      // Predicated region
      $region53: #{tpu_custom_call.1} parent=5 // pred_check
        %p365 = pneg %p364
      $region54: #{tpu_custom_call.1} parent=5 // pred_check_branch
        %367 = sbr.rel (%p365) target = $region56
      $region55: #{tpu_custom_call.1} parent=5 // pred_region
        %s368 = ssub.s32 %s14, 2
      $region56: #{tpu_custom_call.1} parent=5 // pred_fallthru
        _
    $region6: #{tpu_custom_call.1} parent=1 // loop_footer
      %s18 = sadd.s32 1, %s14
    $region7: #{tpu_custom_call.1} parent=1 // loop_footer_branch
      %13 = sbr.rel target = $region3
    $region8: #{tpu_custom_call.1} parent=1 // loop_exit
      _
    %369 = vsyncpa [#allocation5], 1
    %s370 = scalar_lea.sflag [#allocation5], 1
    %371 = vsyncpa %s370, 1
    %372 = vsyncpa [#allocation6], 1
    %s373 = scalar_lea.sflag [#allocation6], 1
    %374 = vsyncpa %s373, 1

</llo_original>
